<compile_context>
chip_gen: v6e
topology: v6e:2x2x1
jax: 0.10.0
libtpu: 0.0.40
codegen_flags: <defaults>
</compile_context>

<pallas_src>
import jax
import jax.numpy as jnp
from jax.experimental import pallas as pl
from jax.experimental.pallas import tpu as pltpu


def _round_up(n, m):
    return ((n + m - 1) // m) * m


# ---------------------------------------------------------------------------
# Phase 1: per-row (per (b, c)) sum over the flattened spatial axis.
# Grid = (row tiles, HW tiles); HW (reduction) axis is LAST and "arbitrary";
# the output block index is constant along it, so it stays resident in VMEM
# and acts as the accumulator (f32).
# ---------------------------------------------------------------------------
def row_sum_kernel(x_ref, o_ref):
    k = pl.program_id(1)

    @pl.when(k == 0)
    def _():
        o_ref[...] = jnp.zeros_like(o_ref)

    o_ref[...] += jnp.sum(x_ref[...].astype(jnp.float32), axis=-1, keepdims=True)


# ---------------------------------------------------------------------------
# Phase 2: streaming scale  out = x * (1 + sigmoid(conv(pooled)))
# scale is passed pre-added (+1 done once per (b, c) in the wrapper), so the
# kernel is a single broadcasted multiply per element (pure mem-bound pass).
# ---------------------------------------------------------------------------
def scale_kernel(x_ref, s_ref, o_ref):
    o_ref[...] = x_ref[...] * s_ref[...]


def att_layer_forward(x, conv_w, *, row_tile=256, lane_tile=512):
    """x: (B, C, H, W) float32 NCHW; conv_w: (3,) float32 Conv1d(1,1,3,bias=False) weight."""
    B, C, H, W = x.shape
    HW = H * W
    R = B * C

    xf = x.reshape(R, HW)

    # Tile sizes: (8, 128)-aligned, capped so a double-buffered in+out pair
    # stays ~2 MiB (safe for v5e/v6e 128 MiB and v7x 64 MiB VMEM).
    TR = min(row_tile, _round_up(R, 8))
    THW = min(lane_tile, _round_up(HW, 128))
    Rp = _round_up(R, TR)
    HWp = _round_up(HW, THW)

    if (Rp, HWp) != (R, HW):
        xp = jnp.zeros((Rp, HWp), xf.dtype).at[:R, :HW].set(xf)
    else:
        xp = xf

    grid = (Rp // TR, HWp // THW)

    # ---- Phase 1: row sums (Pallas tiled reduction) ----
    sums = pl.pallas_call(
        row_sum_kernel,
        out_shape=jax.ShapeDtypeStruct((Rp, 1), jnp.float32),
        grid=grid,
        in_specs=[pl.BlockSpec((TR, THW), lambda i, k: (i, k))],
        out_specs=pl.BlockSpec((TR, 1), lambda i, k: (i, 0)),
        compiler_params=pltpu.CompilerParams(
            dimension_semantics=("parallel", "arbitrary")),
    )(xp)

    # Mean normalized by the TRUE spatial size (zero padding does not perturb the sum).
    pooled = sums[:R, 0].reshape(B, C) / float(HW)                 # (B, C) f32

    # ---- Glue: 3-tap channel conv (k=3, pad=1, no bias) + sigmoid + 1 ----
    padded = jnp.pad(pooled, ((0, 0), (1, 1)))
    y = (conv_w[0] * padded[:, :-2]
         + conv_w[1] * padded[:, 1:-1]
         + conv_w[2] * padded[:, 2:])                              # (B, C)
    scale = 1.0 + jax.nn.sigmoid(y)                                # x*att + x == x*(att+1)

    scale_rows = scale.reshape(R, 1).astype(xf.dtype)
    if Rp != R:
        scale_rows = jnp.zeros((Rp, 1), xf.dtype).at[:R].set(scale_rows)

    # ---- Phase 2: streaming, fully pipelined elementwise scale ----
    out = pl.pallas_call(
        scale_kernel,
        out_shape=jax.ShapeDtypeStruct((Rp, HWp), xf.dtype),
        grid=grid,
        in_specs=[
            pl.BlockSpec((TR, THW), lambda i, j: (i, j)),
            pl.BlockSpec((TR, 1), lambda i, j: (i, 0)),
        ],
        out_specs=pl.BlockSpec((TR, THW), lambda i, j: (i, j)),
        compiler_params=pltpu.CompilerParams(
            dimension_semantics=("parallel", "parallel")),
    )(xp, scale_rows)

    return out[:R, :HW].reshape(B, C, H, W)


def att_layer_reference(x, conv_w):
    """Pure-JAX reference mirroring the PyTorch module."""
    pooled = jnp.mean(x, axis=(2, 3))                              # (B, C)
    padded = jnp.pad(pooled, ((0, 0), (1, 1)))                     # zero pad channels
    y = (conv_w[0] * padded[:, :-2]
         + conv_w[1] * padded[:, 1:-1]
         + conv_w[2] * padded[:, 2:])                              # conv1d k=3, pad=1
    att = jax.nn.sigmoid(y)
    return x * att[:, :, None, None] + x


if __name__ == "__main__":
    key = jax.random.PRNGKey(0)
    kx, kw = jax.random.split(key)

    B, C, H, W = 2, 4, 16, 16
    x = jax.random.normal(kx, (B, C, H, W), dtype=jnp.float32)

    # Conv1d(1, 1, kernel_size=3, bias=False) weight: PyTorch-style uniform init.
    bound = (1.0 / 3.0) ** 0.5
    conv_w = jax.random.uniform(kw, (3,), minval=-bound, maxval=bound, dtype=jnp.float32)

    out = att_layer_forward(x, conv_w)
    out = jax.block_until_ready(out)

    ref = att_layer_reference(x, conv_w)
    assert out.shape == (B, C, H, W)
    assert jnp.allclose(out, ref, atol=1e-5, rtol=1e-5)

    print("KERNEL_OK")
</pallas_src>

<mosaic_0001>
module attributes {stable_mosaic.version = 11 : i64} {
  func.func @row_sum_kernel(%arg0: i32, %arg1: i32, %arg2: memref<8x256xf32, #tpu.memory_space<vmem>>, %arg3: memref<8x1xf32, #tpu.memory_space<vmem>>) attributes {dimension_semantics = [#tpu.dimension_semantics<parallel>, #tpu.dimension_semantics<arbitrary>], iteration_bounds = array<i64: 1, 1>, scalar_prefetch = 0 : i64, scratch_operands = 0 : i64, tpu.core_type = #tpu.core_type<tc>, window_params = [{transform_indices = @transform_0, window_bounds = array<i64: 8, 256>}, {transform_indices = @transform_1, window_bounds = array<i64: 8, 1>}]} {
    %c0_i32 = arith.constant 0 : i32
    %0 = arith.cmpi eq, %arg1, %c0_i32 : i32
    %1 = arith.extui %0 : i1 to i32
    %c0_i32_0 = arith.constant 0 : i32
    %2 = arith.cmpi ne, %1, %c0_i32_0 : i32
    scf.if %2 {
      %cst_6 = arith.constant 0.000000e+00 : f32
      %9 = vector.broadcast %cst_6 : f32 to vector<8x1xf32>
      %c0_7 = arith.constant 0 : index
      %c0_8 = arith.constant 0 : index
      %10 = vector.load %arg3[%c0_7, %c0_8] : memref<8x1xf32, #tpu.memory_space<vmem>>, vector<8x1xf32>
      tpu.vector_store %arg3[%c0_7, %c0_8], %9 {strides = array<i32>} : memref<8x1xf32, #tpu.memory_space<vmem>>, vector<8x1xf32>,
    } else {
    }
    %c0 = arith.constant 0 : index
    %c0_1 = arith.constant 0 : index
    %3 = vector.load %arg3[%c0, %c0_1] : memref<8x1xf32, #tpu.memory_space<vmem>>, vector<8x1xf32>
    %c0_2 = arith.constant 0 : index
    %c0_3 = arith.constant 0 : index
    %4 = vector.load %arg2[%c0_2, %c0_3] : memref<8x256xf32, #tpu.memory_space<vmem>>, vector<8x256xf32>
    %cst = arith.constant dense<0.000000e+00> : vector<8xf32>
    %5 = vector.multi_reduction <add>, %4, %cst [1] : vector<8x256xf32> to vector<8xf32>
    %6 = vector.shape_cast %5 : vector<8xf32> to vector<8x1xf32>
    %7 = arith.addf %3, %6 : vector<8x1xf32>
    %c0_4 = arith.constant 0 : index
    %c0_5 = arith.constant 0 : index
    %8 = vector.load %arg3[%c0_4, %c0_5] : memref<8x1xf32, #tpu.memory_space<vmem>>, vector<8x1xf32>
    tpu.vector_store %arg3[%c0_4, %c0_5], %7 {strides = array<i32>} : memref<8x1xf32, #tpu.memory_space<vmem>>, vector<8x1xf32>,
    return
  }
  func.func @transform_0(%arg0: i32, %arg1: i32) -> (i32, i32) {
    %c0_i32 = arith.constant 0 : i32
    return %arg0, %arg1 : i32, i32
  }
  func.func @transform_1(%arg0: i32, %arg1: i32) -> (i32, i32) {
    %c0_i32 = arith.constant 0 : i32
    %c0_i32_0 = arith.constant 0 : i32
    return %arg0, %c0_i32 : i32, i32
  }
}

</mosaic_0001>

<llo_original>
// kernel: tpu_custom_call.1
$region0: #{tpu_custom_call.1}
  #allocation0 [shape = 'u32[]', space=smem, size = 0x4, offset = 0x4, fixed_abs, tag = 'smem constant byte address 0x4 - core index']
  #allocation1 [shape = 'u32[144,128]{1,0:T(1,128)}', space=vmem, size = 0x12000, scoped, tag = 'internal scratch']
  %s0 = inlined_call_operand.hbm [shape: f32[8,256], index: 0, kind: input, shape index: {}]
  %s1 = inlined_call_operand.vmem [shape: f32[8,1], index: 1, kind: output, shape index: {}]
  %s2 = sld [smem:[#allocation0]]
  $region22: #{tpu_custom_call.1} parent=0
    _
  %s4 = ssub.s32 1, %s2
  %s5 = scalar_select 0, %s4, %s2
  $region1: #{tpu_custom_call.1} parent=0
    #allocation2 [shape = 'u8[8192]{0}', space=vmem, size = 0x2000, scoped, tag = 'input window, operand 0, single buffered']
    #allocation3 [shape = 's32[1]{0}', space=sflag, size = 0x4, scoped, tag = 'scoped memory for tpu_custom_call.1']
    %6 = vsyncpa [#allocation3], 0
    // Predicated region
    $region2: #{tpu_custom_call.1} parent=1 // pred_check
      _
    $region3: #{tpu_custom_call.1} parent=1 // pred_check_branch
      %8 = sbr.rel (0) target = $region5
    $region4: #{tpu_custom_call.1} parent=1 // pred_region
      %s10 = ssub.s32 256, 256
      %11 = vsyncadd [#allocation3], %s10
      %s13 = sshll.u32 [#allocation2], 4
      %s14 = int_to_ptr.vmem [resolvable:$true] %s13
      %16 = dma.hbm_to_vmem [thread:$0]  %s0, 256, %s14, [#allocation3]
    $region5: #{tpu_custom_call.1} parent=1 // pred_fallthru
      _
    // Predicated region
    $region6: #{tpu_custom_call.1} parent=1 // pred_check
      _
    $region7: #{tpu_custom_call.1} parent=1 // pred_check_branch
      %18 = sbr.rel (0) target = $region9
    $region8: #{tpu_custom_call.1} parent=1 // pred_region
      %19 = dma.done [#allocation3], 256
    $region9: #{tpu_custom_call.1} parent=1 // pred_fallthru
      _
    %p20 = scmp.eq.s32.totalorder 0, 0
    // Predicated region
    $region10: #{tpu_custom_call.1} parent=1 // pred_check
      %p21 = pneg %p20
    $region11: #{tpu_custom_call.1} parent=1 // pred_check_branch
      %23 = sbr.rel (%p21) target = $region13
    $region12: #{tpu_custom_call.1} parent=1 // pred_region
      %vm24 = vcmask 7168
      %25 = vst.msk [vmem:[%s1] sm:$0xff] %vm24, 0.0
    $region13: #{tpu_custom_call.1} parent=1 // pred_fallthru
      _
    %v26 = vld [vmem:[%s1] sm:$0xff]
    %v27 = vld [vmem:[#allocation2] sm:$0xff]
    %v28 = vld [vmem:[#allocation2 + $0x8] sm:$0xff]
    %v29 = vadd.f32 %v27, %v28
    %30 = vadd.xlane.f32.xlu0 %v29
    %v31 = vpop.xlane.xlu0 %30
    %v32 = vadd.f32 %v26, %v31
    %vm33 = vcmask 7168
    %34 = vst.msk [vmem:[%s1] sm:$0xff] %vm33, %v32
    // Predicated region
    $region14: #{tpu_custom_call.1} parent=1 // pred_check
      _
    $region15: #{tpu_custom_call.1} parent=1 // pred_check_branch
      %36 = sbr.rel (0) target = $region17
    $region16: #{tpu_custom_call.1} parent=1 // pred_region
      _
    $region17: #{tpu_custom_call.1} parent=1 // pred_fallthru
      _
    // Predicated region
    $region18: #{tpu_custom_call.1} parent=1 // pred_check
      _
    $region19: #{tpu_custom_call.1} parent=1 // pred_check_branch
      %38 = sbr.rel (0) target = $region21
    $region20: #{tpu_custom_call.1} parent=1 // pred_region
      _
    $region21: #{tpu_custom_call.1} parent=1 // pred_fallthru
      _
    %39 = vsyncpa [#allocation3], 1

</llo_original>
